<compile_context>
chip_gen: v7x
topology: tpu7x:2x2x1
jax: 0.10.0
libtpu: 0.0.40
codegen_flags: <defaults>
</compile_context>

<pallas_src>
import functools

import jax
import jax.numpy as jnp
from jax.experimental import pallas as pl
from jax.experimental.pallas import tpu as pltpu


def _round_up(x, m):
    return ((x + m - 1) // m) * m


def _vmem_limit_bytes():
    """Per-generation VMEM scoped limit: ~85% of physical, capped at 112 MiB."""
    try:
        cap = pltpu.get_tpu_info().vmem_capacity_bytes
        return int(min(cap * 0.85, 112 * 1024 * 1024))
    except Exception:
        return 48 * 1024 * 1024  # safe on every generation (incl. v7x 64 MiB)


def _inst_fn_kernel(x_ref,
                    w0_ref, b0_ref,
                    w1_ref, b1_ref,
                    w2_ref, b2_ref,
                    w3_ref, b3_ref,
                    out_ref,
                    *, approx_recip):
    """One batch tile of the MLP + softmax. Weights are VMEM-resident."""
    x = x_ref[...].astype(jnp.float32)          # (TM, 2)
    w0 = w0_ref[...].astype(jnp.float32)        # (2, H)

    # Linear(2, H) as two VPU broadcast FMAs (K=2 would waste an MXU pass).
    h = x[:, 0:1] * w0[0:1, :] + x[:, 1:2] * w0[1:2, :] + b0_ref[...]
    h = jnp.maximum(h, 0.0)

    # Hidden Linear(H, H) + ReLU (n_hidden = 2), bf16 operands, f32 accumulate.
    h = jnp.dot(h.astype(jnp.bfloat16), w1_ref[...],
                preferred_element_type=jnp.float32) + b1_ref[...]
    h = jnp.maximum(h, 0.0)
    h = jnp.dot(h.astype(jnp.bfloat16), w2_ref[...],
                preferred_element_type=jnp.float32) + b2_ref[...]
    h = jnp.maximum(h, 0.0)

    # Output Linear(H, out) padded to a lane-dense 128-wide slab.  The padded
    # lanes already carry a -1e30 bias (baked in prepare_params), so their
    # exp() underflows to exactly 0 — no in-kernel mask needed.
    logits = jnp.dot(h.astype(jnp.bfloat16), w3_ref[...],
                     preferred_element_type=jnp.float32) + b3_ref[...]

    # softmax(dim=-1); post-matmul math stays f32 (v5e VPU/EUP have no bf16).
    m = jnp.max(logits, axis=-1, keepdims=True)
    e = jnp.exp(logits - m)
    denom = jnp.sum(e, axis=-1, keepdims=True)
    out_ref[...] = (e * pl.reciprocal(denom, approx=approx_recip)).astype(out_ref.dtype)


def prepare_params(params_f32):
    """One-time (amortized) conversion of f32 params into kernel layout:
       bf16 hidden/output weights, f32 biases, output padded to 128 lanes with
       the pad-lane softmax mask baked into b3 (-1e30 on padded lanes)."""
    (w0, b0), (w1, b1), (w2, b2), (w3, b3) = params_f32
    out_dim = w3.shape[1]
    out_pad = max(128, _round_up(out_dim, 128))
    pad = out_pad - out_dim
    return dict(
        w0=w0.astype(jnp.float32), b0=b0.astype(jnp.float32),
        w1=w1.astype(jnp.bfloat16), b1=b1.astype(jnp.float32),
        w2=w2.astype(jnp.bfloat16), b2=b2.astype(jnp.float32),
        w3=jnp.pad(w3, ((0, 0), (0, pad))).astype(jnp.bfloat16),
        b3=jnp.pad(b3, ((0, 0), (0, pad)),
                   constant_values=-1e30).astype(jnp.float32),
        out_dim=out_dim,
    )


def inst_fn_forward(t, state, kparams, *, block_rows=256,
                    out_dtype=jnp.float32, approx_recip=False):
    """JAX/Pallas equivalent of InstFn.forward(t, state).

    state = (x, input); returns (x, softmax(mlp(input))).  `t` is unused
    (matches PyTorch).  `input` may have arbitrary leading batch dims
    (e.g. (K_stages, B, 2)) — they are flattened into one batch so K solver
    RHS evaluations share a single pallas_call and a single weight stream.
    """
    x, inp = state
    lead_shape = inp.shape[:-1]
    in_dim = inp.shape[-1]
    inp2 = inp.reshape(-1, in_dim)
    B = inp2.shape[0]

    H = kparams["w1"].shape[0]
    out_dim = kparams["out_dim"]
    out_pad = kparams["w3"].shape[1]

    # Batch tile: multiple of 16 (bf16 sublane packing for the h casts),
    # defaults to 256 for large B (MXU M alignment on v6e/v7x).
    TM = min(_round_up(block_rows, 16), _round_up(B, 16))
    B_pad = _round_up(B, TM)
    if B_pad != B:
        inp2 = jnp.pad(inp2, ((0, B_pad - B), (0, 0)))
    n_steps = B_pad // TM

    # Tiny grids are weight-DMA-bound: megacore sharding would duplicate the
    # resident weight copy per TC for no compute win.  Only go parallel when
    # there is enough batch work to amortize it.
    semantics = ("arbitrary",) if n_steps <= 4 else ("parallel",)

    const = lambda i: (0, 0)          # weights: same block every step -> resident
    row = lambda i: (i, 0)            # input/output: tiled over batch
    resident = pl.Buffered(1)         # no double buffer for never-changing blocks

    kernel = functools.partial(_inst_fn_kernel, approx_recip=approx_recip)

    out = pl.pallas_call(
        kernel,
        out_shape=jax.ShapeDtypeStruct((B_pad, out_pad), out_dtype),
        grid=(n_steps,),
        in_specs=[
            pl.BlockSpec((TM, in_dim), row),
            pl.BlockSpec((in_dim, H), const, pipeline_mode=resident),
            pl.BlockSpec((1, H), const, pipeline_mode=resident),
            pl.BlockSpec((H, H), const, pipeline_mode=resident),
            pl.BlockSpec((1, H), const, pipeline_mode=resident),
            pl.BlockSpec((H, H), const, pipeline_mode=resident),
            pl.BlockSpec((1, H), const, pipeline_mode=resident),
            pl.BlockSpec((H, out_pad), const, pipeline_mode=resident),
            pl.BlockSpec((1, out_pad), const, pipeline_mode=resident),
        ],
        out_specs=pl.BlockSpec((TM, out_pad), row),
        compiler_params=pltpu.CompilerParams(
            dimension_semantics=semantics,
            vmem_limit_bytes=_vmem_limit_bytes(),
        ),
    )(inp2,
      kparams["w0"], kparams["b0"],
      kparams["w1"], kparams["b1"],
      kparams["w2"], kparams["b2"],
      kparams["w3"], kparams["b3"])

    probs = out[:B, :out_dim].reshape(*lead_shape, out_dim)
    return (x, probs)


def init_params(key, hidden_dim=128, n_hidden=2, in_dim=2, out_dim=3):
    """Deterministic nn.Linear-style init: U(-1/sqrt(fan_in), 1/sqrt(fan_in))."""
    dims = [in_dim] + [hidden_dim] * (n_hidden + 1) + [out_dim]
    params = []
    keys = jax.random.split(key, 2 * (len(dims) - 1))
    for i in range(len(dims) - 1):
        fan_in, fan_out = dims[i], dims[i + 1]
        bound = 1.0 / jnp.sqrt(jnp.float32(fan_in))
        w = jax.random.uniform(keys[2 * i], (fan_in, fan_out), jnp.float32,
                               minval=-bound, maxval=bound)
        b = jax.random.uniform(keys[2 * i + 1], (1, fan_out), jnp.float32,
                               minval=-bound, maxval=bound)
        params.append((w, b))
    return tuple(params)


def _reference_forward(t, state, params):
    """Pure-JAX f32 reference for a correctness sanity check."""
    x, inp = state
    h = inp.astype(jnp.float32)
    for i, (w, b) in enumerate(params):
        h = h @ w + b
        if i < len(params) - 1:
            h = jnp.maximum(h, 0.0)
    return (x, jax.nn.softmax(h, axis=-1))


if __name__ == "__main__":
    key = jax.random.PRNGKey(0)
    k_params, k_x, k_inp = jax.random.split(key, 3)

    HIDDEN = 128   # small, lane-aligned stand-in for the default 1024
    BATCH = 48

    params_f32 = init_params(k_params, hidden_dim=HIDDEN, n_hidden=2)
    kparams = prepare_params(params_f32)   # one-time bf16 / padded packing

    # state = (x, input); x is an arbitrary passthrough tensor, input is (B, 2)
    x_state = jax.random.normal(k_x, (BATCH, 4), jnp.float32)
    inp = jax.random.normal(k_inp, (BATCH, 2), jnp.float32)
    t = jnp.float32(0.0)   # unused, matches the PyTorch signature

    # block_rows=16 -> grid of 3 batch tiles, exercising the resident-weight grid.
    x_out, probs = inst_fn_forward(t, (x_state, inp), kparams, block_rows=16)
    jax.block_until_ready(probs)

    # Sanity check against the pure-f32 reference (bf16 weights loosen
    # numerics, so tolerance is 2e-2 on probabilities).
    _, probs_ref = _reference_forward(t, (x_state, inp), params_f32)
    assert probs.shape == (BATCH, 3)
    assert jnp.allclose(probs, probs_ref, atol=2e-2, rtol=2e-2)
    assert jnp.allclose(jnp.sum(probs, axis=-1), 1.0, atol=1e-3)
    assert jnp.allclose(x_out, x_state)

    print("KERNEL_OK")
</pallas_src>

<mosaic_0001>
module attributes {stable_mosaic.version = 11 : i64} {
  func.func @_inst_fn_kernel(%arg0: i32, %arg1: memref<16x2xf32, #tpu.memory_space<vmem>>, %arg2: memref<2x128xf32, #tpu.memory_space<vmem>>, %arg3: memref<1x128xf32, #tpu.memory_space<vmem>>, %arg4: memref<128x128xbf16, #tpu.memory_space<vmem>>, %arg5: memref<1x128xf32, #tpu.memory_space<vmem>>, %arg6: memref<128x128xbf16, #tpu.memory_space<vmem>>, %arg7: memref<1x128xf32, #tpu.memory_space<vmem>>, %arg8: memref<128x128xbf16, #tpu.memory_space<vmem>>, %arg9: memref<1x128xf32, #tpu.memory_space<vmem>>, %arg10: memref<16x128xf32, #tpu.memory_space<vmem>>) attributes {dimension_semantics = [#tpu.dimension_semantics<arbitrary>], iteration_bounds = array<i64: 3>, scalar_prefetch = 0 : i64, scratch_operands = 0 : i64, tpu.core_type = #tpu.core_type<tc>, window_params = [{transform_indices = @transform_0, window_bounds = array<i64: 16, 2>}, {pipeline_mode = #tpu.pipeline_mode<synchronous>, transform_indices = @transform_1, window_bounds = array<i64: 2, 128>}, {pipeline_mode = #tpu.pipeline_mode<synchronous>, transform_indices = @transform_2, window_bounds = array<i64: 1, 128>}, {pipeline_mode = #tpu.pipeline_mode<synchronous>, transform_indices = @transform_3, window_bounds = array<i64: 128, 128>}, {pipeline_mode = #tpu.pipeline_mode<synchronous>, transform_indices = @transform_4, window_bounds = array<i64: 1, 128>}, {pipeline_mode = #tpu.pipeline_mode<synchronous>, transform_indices = @transform_5, window_bounds = array<i64: 128, 128>}, {pipeline_mode = #tpu.pipeline_mode<synchronous>, transform_indices = @transform_6, window_bounds = array<i64: 1, 128>}, {pipeline_mode = #tpu.pipeline_mode<synchronous>, transform_indices = @transform_7, window_bounds = array<i64: 128, 128>}, {pipeline_mode = #tpu.pipeline_mode<synchronous>, transform_indices = @transform_8, window_bounds = array<i64: 1, 128>}, {transform_indices = @transform_9, window_bounds = array<i64: 16, 128>}]} {
    %c0 = arith.constant 0 : index
    %c0_0 = arith.constant 0 : index
    %0 = vector.load %arg1[%c0, %c0_0] : memref<16x2xf32, #tpu.memory_space<vmem>>, vector<16x2xf32>
    %c0_1 = arith.constant 0 : index
    %c0_2 = arith.constant 0 : index
    %1 = vector.load %arg2[%c0_1, %c0_2] : memref<2x128xf32, #tpu.memory_space<vmem>>, vector<2x128xf32>
    %2 = vector.extract_strided_slice %0 {offsets = [0, 0], sizes = [16, 1], strides = [1, 1]} : vector<16x2xf32> to vector<16x1xf32>
    %3 = vector.extract_strided_slice %1 {offsets = [0, 0], sizes = [1, 128], strides = [1, 1]} : vector<2x128xf32> to vector<1x128xf32>
    %4 = vector.broadcast %2 : vector<16x1xf32> to vector<16x128xf32>
    %5 = vector.broadcast %3 : vector<1x128xf32> to vector<16x128xf32>
    %6 = arith.mulf %4, %5 : vector<16x128xf32>
    %7 = vector.extract_strided_slice %0 {offsets = [0, 1], sizes = [16, 1], strides = [1, 1]} : vector<16x2xf32> to vector<16x1xf32>
    %8 = vector.extract_strided_slice %1 {offsets = [1, 0], sizes = [1, 128], strides = [1, 1]} : vector<2x128xf32> to vector<1x128xf32>
    %9 = vector.broadcast %7 : vector<16x1xf32> to vector<16x128xf32>
    %10 = vector.broadcast %8 : vector<1x128xf32> to vector<16x128xf32>
    %11 = arith.mulf %9, %10 : vector<16x128xf32>
    %12 = arith.addf %6, %11 : vector<16x128xf32>
    %c0_3 = arith.constant 0 : index
    %c0_4 = arith.constant 0 : index
    %13 = vector.load %arg3[%c0_3, %c0_4] : memref<1x128xf32, #tpu.memory_space<vmem>>, vector<1x128xf32>
    %14 = vector.broadcast %13 : vector<1x128xf32> to vector<16x128xf32>
    %15 = arith.addf %12, %14 : vector<16x128xf32>
    %cst = arith.constant 0.000000e+00 : f32
    %16 = vector.broadcast %cst : f32 to vector<16x128xf32>
    %17 = arith.maximumf %15, %16 : vector<16x128xf32>
    %18 = arith.truncf %17 : vector<16x128xf32> to vector<16x128xbf16>
    %c0_5 = arith.constant 0 : index
    %c0_6 = arith.constant 0 : index
    %19 = vector.load %arg4[%c0_5, %c0_6] : memref<128x128xbf16, #tpu.memory_space<vmem>>, vector<128x128xbf16>
    %cst_7 = arith.constant dense<0.000000e+00> : vector<16x128xf32>
    %20 = tpu.matmul %18, %19, %cst_7 {dimension_numbers = #tpu.dot_dimension_numbers<[1], [0], [0], [1], [0, 0, 1, 1], [], []>} : vector<16x128xbf16>, vector<128x128xbf16>, vector<16x128xf32> -> vector<16x128xf32>
    %c0_8 = arith.constant 0 : index
    %c0_9 = arith.constant 0 : index
    %21 = vector.load %arg5[%c0_8, %c0_9] : memref<1x128xf32, #tpu.memory_space<vmem>>, vector<1x128xf32>
    %22 = vector.broadcast %21 : vector<1x128xf32> to vector<16x128xf32>
    %23 = arith.addf %20, %22 : vector<16x128xf32>
    %cst_10 = arith.constant 0.000000e+00 : f32
    %24 = vector.broadcast %cst_10 : f32 to vector<16x128xf32>
    %25 = arith.maximumf %23, %24 : vector<16x128xf32>
    %26 = arith.truncf %25 : vector<16x128xf32> to vector<16x128xbf16>
    %c0_11 = arith.constant 0 : index
    %c0_12 = arith.constant 0 : index
    %27 = vector.load %arg6[%c0_11, %c0_12] : memref<128x128xbf16, #tpu.memory_space<vmem>>, vector<128x128xbf16>
    %cst_13 = arith.constant dense<0.000000e+00> : vector<16x128xf32>
    %28 = tpu.matmul %26, %27, %cst_13 {dimension_numbers = #tpu.dot_dimension_numbers<[1], [0], [0], [1], [0, 0, 1, 1], [], []>} : vector<16x128xbf16>, vector<128x128xbf16>, vector<16x128xf32> -> vector<16x128xf32>
    %c0_14 = arith.constant 0 : index
    %c0_15 = arith.constant 0 : index
    %29 = vector.load %arg7[%c0_14, %c0_15] : memref<1x128xf32, #tpu.memory_space<vmem>>, vector<1x128xf32>
    %30 = vector.broadcast %29 : vector<1x128xf32> to vector<16x128xf32>
    %31 = arith.addf %28, %30 : vector<16x128xf32>
    %cst_16 = arith.constant 0.000000e+00 : f32
    %32 = vector.broadcast %cst_16 : f32 to vector<16x128xf32>
    %33 = arith.maximumf %31, %32 : vector<16x128xf32>
    %34 = arith.truncf %33 : vector<16x128xf32> to vector<16x128xbf16>
    %c0_17 = arith.constant 0 : index
    %c0_18 = arith.constant 0 : index
    %35 = vector.load %arg8[%c0_17, %c0_18] : memref<128x128xbf16, #tpu.memory_space<vmem>>, vector<128x128xbf16>
    %cst_19 = arith.constant dense<0.000000e+00> : vector<16x128xf32>
    %36 = tpu.matmul %34, %35, %cst_19 {dimension_numbers = #tpu.dot_dimension_numbers<[1], [0], [0], [1], [0, 0, 1, 1], [], []>} : vector<16x128xbf16>, vector<128x128xbf16>, vector<16x128xf32> -> vector<16x128xf32>
    %c0_20 = arith.constant 0 : index
    %c0_21 = arith.constant 0 : index
    %37 = vector.load %arg9[%c0_20, %c0_21] : memref<1x128xf32, #tpu.memory_space<vmem>>, vector<1x128xf32>
    %38 = vector.broadcast %37 : vector<1x128xf32> to vector<16x128xf32>
    %39 = arith.addf %36, %38 : vector<16x128xf32>
    %cst_22 = arith.constant dense<0xFF800000> : vector<16xf32>
    %40 = vector.multi_reduction <maximumf>, %39, %cst_22 [1] : vector<16x128xf32> to vector<16xf32>
    %41 = vector.shape_cast %40 : vector<16xf32> to vector<16x1xf32>
    %42 = vector.broadcast %41 : vector<16x1xf32> to vector<16x128xf32>
    %43 = arith.subf %39, %42 : vector<16x128xf32>
    %44 = math.exp %43 : vector<16x128xf32>
    %cst_23 = arith.constant dense<0.000000e+00> : vector<16xf32>
    %45 = vector.multi_reduction <add>, %44, %cst_23 [1] : vector<16x128xf32> to vector<16xf32>
    %46 = vector.shape_cast %45 : vector<16xf32> to vector<16x1xf32>
    %47 = tpu.reciprocal %46 : vector<16x1xf32> -> vector<16x1xf32>
    %48 = vector.broadcast %47 : vector<16x1xf32> to vector<16x128xf32>
    %49 = arith.mulf %44, %48 : vector<16x128xf32>
    %c0_24 = arith.constant 0 : index
    %c0_25 = arith.constant 0 : index
    %50 = vector.load %arg10[%c0_24, %c0_25] : memref<16x128xf32, #tpu.memory_space<vmem>>, vector<16x128xf32>
    tpu.vector_store %arg10[%c0_24, %c0_25], %49 {strides = array<i32>} : memref<16x128xf32, #tpu.memory_space<vmem>>, vector<16x128xf32>,
    return
  }
  func.func @transform_0(%arg0: i32) -> (i32, i32) {
    %c0_i32 = arith.constant 0 : i32
    %c0_i32_0 = arith.constant 0 : i32
    return %arg0, %c0_i32 : i32, i32
  }
  func.func @transform_1(%arg0: i32) -> (i32, i32) {
    %c0_i32 = arith.constant 0 : i32
    %c0_i32_0 = arith.constant 0 : i32
    %c0_i32_1 = arith.constant 0 : i32
    return %c0_i32, %c0_i32_0 : i32, i32
  }
  func.func @transform_2(%arg0: i32) -> (i32, i32) {
    %c0_i32 = arith.constant 0 : i32
    %c0_i32_0 = arith.constant 0 : i32
    %c0_i32_1 = arith.constant 0 : i32
    return %c0_i32, %c0_i32_0 : i32, i32
  }
  func.func @transform_3(%arg0: i32) -> (i32, i32) {
    %c0_i32 = arith.constant 0 : i32
    %c0_i32_0 = arith.constant 0 : i32
    %c0_i32_1 = arith.constant 0 : i32
    return %c0_i32, %c0_i32_0 : i32, i32
  }
  func.func @transform_4(%arg0: i32) -> (i32, i32) {
    %c0_i32 = arith.constant 0 : i32
    %c0_i32_0 = arith.constant 0 : i32
    %c0_i32_1 = arith.constant 0 : i32
    return %c0_i32, %c0_i32_0 : i32, i32
  }
  func.func @transform_5(%arg0: i32) -> (i32, i32) {
    %c0_i32 = arith.constant 0 : i32
    %c0_i32_0 = arith.constant 0 : i32
    %c0_i32_1 = arith.constant 0 : i32
    return %c0_i32, %c0_i32_0 : i32, i32
  }
  func.func @transform_6(%arg0: i32) -> (i32, i32) {
    %c0_i32 = arith.constant 0 : i32
    %c0_i32_0 = arith.constant 0 : i32
    %c0_i32_1 = arith.constant 0 : i32
    return %c0_i32, %c0_i32_0 : i32, i32
  }
  func.func @transform_7(%arg0: i32) -> (i32, i32) {
    %c0_i32 = arith.constant 0 : i32
    %c0_i32_0 = arith.constant 0 : i32
    %c0_i32_1 = arith.constant 0 : i32
    return %c0_i32, %c0_i32_0 : i32, i32
  }
  func.func @transform_8(%arg0: i32) -> (i32, i32) {
    %c0_i32 = arith.constant 0 : i32
    %c0_i32_0 = arith.constant 0 : i32
    %c0_i32_1 = arith.constant 0 : i32
    return %c0_i32, %c0_i32_0 : i32, i32
  }
  func.func @transform_9(%arg0: i32) -> (i32, i32) {
    %c0_i32 = arith.constant 0 : i32
    %c0_i32_0 = arith.constant 0 : i32
    return %arg0, %c0_i32 : i32, i32
  }
}

</mosaic_0001>

<llo_original>
// kernel: tpu_custom_call.1
$region0: #{tpu_custom_call.1}
  #allocation0 [shape = 'u32[]', space=smem, size = 0x4, offset = 0x4, fixed_abs, tag = 'smem constant byte address 0x4 - core index']
  #allocation1 [shape = 'u32[144,128]{1,0:T(1,128)}', space=vmem, size = 0x12000, scoped, tag = 'internal scratch']
  %s0 = inlined_call_operand.vmem [shape: f32[48,2], index: 0, kind: input, shape index: {}]
  %s1 = inlined_call_operand.vmem [shape: f32[2,128], index: 1, kind: input, shape index: {}]
  %s2 = inlined_call_operand.vmem [shape: f32[1,128], index: 2, kind: input, shape index: {}]
  %s3 = inlined_call_operand.hbm [shape: bf16[128,128], index: 3, kind: input, shape index: {}]
  %s4 = inlined_call_operand.vmem [shape: f32[1,128], index: 4, kind: input, shape index: {}]
  %s5 = inlined_call_operand.vmem [shape: bf16[128,128], index: 5, kind: input, shape index: {}]
  %s6 = inlined_call_operand.vmem [shape: f32[1,128], index: 6, kind: input, shape index: {}]
  %s7 = inlined_call_operand.hbm [shape: bf16[128,128], index: 7, kind: input, shape index: {}]
  %s8 = inlined_call_operand.vmem [shape: f32[1,128], index: 8, kind: input, shape index: {}]
  %s9 = inlined_call_operand.hbm [shape: f32[48,128], index: 9, kind: output, shape index: {}]
  %s10 = sld [smem:[#allocation0]]
  $region77: #{tpu_custom_call.1} parent=0
    _
  %s12 = ssub.s32 1, %s10
  %s13 = scalar_select 0, %s12, %s10
  $region1: #{tpu_custom_call.1} parent=0
    #allocation2 [shape = 'u8[32768]{0}', space=vmem, size = 0x8000, scoped, tag = 'input window, operand 3, single buffered']
    #allocation3 [shape = 's32[2]{0}', space=sflag, size = 0x8, scoped, tag = 'scoped memory for tpu_custom_call.1']
    #allocation4 [shape = 's32[2]{0}', space=sflag, size = 0x8, scoped, tag = 'scoped memory for tpu_custom_call.1']
    #allocation5 [shape = 'u8[32768]{0}', space=vmem, size = 0x8000, scoped, tag = 'input window, operand 7, single buffered']
    #allocation6 [shape = 's32[1]{0}', space=sflag, size = 0x4, scoped, tag = 'scoped memory for tpu_custom_call.1']
    #allocation7 [shape = 'u8[16384]{0}', space=vmem, size = 0x4000, scoped, tag = 'output window, operand 0']
    %14 = vsyncpa [#allocation3], 0
    %15 = vsyncpa [#allocation6], 0
    %16 = vsyncpa [#allocation4], 0
    %s17 = scalar_lea.sflag [#allocation4], 1
    %18 = vsyncpa %s17, 0
    loop: start=0, step=1, limit=5
    $region2: #{tpu_custom_call.1} parent=1 // loop_pre_header
      _
    $region3: #{tpu_custom_call.1} parent=1 // loop_header
      %s20 = sphi 0, %s24
      %p21 = scmp.ge.s32.totalorder %s20, 5
      %s30 = sphi 0, %s32
      %s33 = sphi 0, %s30
      %s34 = sphi 0, %s33
      %s50 = sphi 0, %s34
      %s54 = sphi 0, %s54
      %s56 = sphi 0, %s54
      %s57 = sphi 0, %s56
      %s71 = sphi 0, %s57
      %s75 = sphi 0, %s75
      %s77 = sphi 0, %s75
      %s78 = sphi 0, %s77
      %s92 = sphi 0, %s78
      %s96 = sphi 0, %s96
      %s98 = sphi 0, %s96
      %s99 = sphi 0, %s98
      %s113 = sphi 0, %s99
      %s117 = sphi 0, %s117
      %s119 = sphi 0, %s117
      %s120 = sphi 0, %s119
      %s134 = sphi 0, %s120
      %s138 = sphi 0, %s138
      %s140 = sphi 0, %s138
      %s141 = sphi 0, %s140
      %s155 = sphi 0, %s141
      %s159 = sphi 0, %s159
      %s161 = sphi 0, %s159
      %s162 = sphi 0, %s161
      %s176 = sphi 0, %s162
      %s180 = sphi 0, %s180
      %s182 = sphi 0, %s180
      %s183 = sphi 0, %s182
      %s197 = sphi 0, %s183
      %s201 = sphi 0, %s201
      %s203 = sphi 0, %s201
      %s204 = sphi 0, %s203
      %s218 = sphi 0, %s204
      %s224 = sphi 0, %s226
      %s227 = sphi 0, %s224
      %s228 = sphi 0, %s227
      %s244 = sphi 0, %s228
    $region4: #{tpu_custom_call.1} parent=1 // loop_header_branch
      %23 = sbr.rel (%p21) target = $region8
    $region5: #{tpu_custom_call.1} parent=1 // loop_body
      %s25 = ssub.s32 %s20, 1
      %s26 = ssub.s32 %s20, 2
      %s27 = sadd.s32 %s20, 1
      %s28 = ssub.s32 %s20, %s27
      %p29 = scmp.eq.s32.totalorder %s28, 0
      %s31 = sadd.s32 %s30, 1
      %s32 = scalar_select %p29, %s30, %s31
      %p35 = pneg %p29
      %p36 = scmp.eq.s32.totalorder %s20, 2
      %p37 = por %p35, %p36
      %p38 = scmp.ne.s32.totalorder %s30, %s33
      %p39 = scmp.eq.s32.totalorder %s20, 0
      %p40 = por %p38, %p39
      %p41 = scmp.ne.s32.totalorder %s30, %s33
      %p42 = scmp.eq.s32.totalorder %s25, 2
      %p43 = por %p41, %p42
      %p44 = scmp.ne.s32.totalorder %s33, %s34
      %p45 = scmp.eq.s32.totalorder %s25, 0
      %p46 = por %p44, %p45
      %p47 = scmp.ne.s32.totalorder %s33, %s34
      %p48 = scmp.eq.s32.totalorder %s26, 2
      %p49 = por %p47, %p48
      %p51 = scmp.ne.s32.totalorder %s34, %s50
      %p52 = scmp.eq.s32.totalorder %s26, 0
      %p53 = por %p51, %p52
      %s55 = sadd.s32 %s54, 1
      %p58 = scmp.eq.s32.totalorder %s20, 2
      %p59 = scmp.ne.s32.totalorder %s54, %s56
      %p60 = scmp.eq.s32.totalorder %s20, 0
      %p61 = por %p59, %p60
      %p62 = scmp.ne.s32.totalorder %s54, %s56
      %p63 = scmp.eq.s32.totalorder %s25, 2
      %p64 = por %p62, %p63
      %p65 = scmp.ne.s32.totalorder %s56, %s57
      %p66 = scmp.eq.s32.totalorder %s25, 0
      %p67 = por %p65, %p66
      %p68 = scmp.ne.s32.totalorder %s56, %s57
      %p69 = scmp.eq.s32.totalorder %s26, 2
      %p70 = por %p68, %p69
      %p72 = scmp.ne.s32.totalorder %s57, %s71
      %p73 = scmp.eq.s32.totalorder %s26, 0
      %p74 = por %p72, %p73
      %s76 = sadd.s32 %s75, 1
      %p79 = scmp.eq.s32.totalorder %s20, 2
      %p80 = scmp.ne.s32.totalorder %s75, %s77
      %p81 = scmp.eq.s32.totalorder %s20, 0
      %p82 = por %p80, %p81
      %p83 = scmp.ne.s32.totalorder %s75, %s77
      %p84 = scmp.eq.s32.totalorder %s25, 2
      %p85 = por %p83, %p84
      %p86 = scmp.ne.s32.totalorder %s77, %s78
      %p87 = scmp.eq.s32.totalorder %s25, 0
      %p88 = por %p86, %p87
      %p89 = scmp.ne.s32.totalorder %s77, %s78
      %p90 = scmp.eq.s32.totalorder %s26, 2
      %p91 = por %p89, %p90
      %p93 = scmp.ne.s32.totalorder %s78, %s92
      %p94 = scmp.eq.s32.totalorder %s26, 0
      %p95 = por %p93, %p94
      %s97 = sadd.s32 %s96, 1
      %p100 = scmp.eq.s32.totalorder %s20, 2
      %p101 = scmp.ne.s32.totalorder %s96, %s98
      %p102 = scmp.eq.s32.totalorder %s20, 0
      %p103 = por %p101, %p102
      %p104 = scmp.ne.s32.totalorder %s96, %s98
      %p105 = scmp.eq.s32.totalorder %s25, 2
      %p106 = por %p104, %p105
      %p107 = scmp.ne.s32.totalorder %s98, %s99
      %p108 = scmp.eq.s32.totalorder %s25, 0
      %p109 = por %p107, %p108
      %p110 = scmp.ne.s32.totalorder %s98, %s99
      %p111 = scmp.eq.s32.totalorder %s26, 2
      %p112 = por %p110, %p111
      %p114 = scmp.ne.s32.totalorder %s99, %s113
      %p115 = scmp.eq.s32.totalorder %s26, 0
      %p116 = por %p114, %p115
      %s118 = sadd.s32 %s117, 1
      %p121 = scmp.eq.s32.totalorder %s20, 2
      %p122 = scmp.ne.s32.totalorder %s117, %s119
      %p123 = scmp.eq.s32.totalorder %s20, 0
      %p124 = por %p122, %p123
      %p125 = scmp.ne.s32.totalorder %s117, %s119
      %p126 = scmp.eq.s32.totalorder %s25, 2
      %p127 = por %p125, %p126
      %p128 = scmp.ne.s32.totalorder %s119, %s120
      %p129 = scmp.eq.s32.totalorder %s25, 0
      %p130 = por %p128, %p129
      %p131 = scmp.ne.s32.totalorder %s119, %s120
      %p132 = scmp.eq.s32.totalorder %s26, 2
      %p133 = por %p131, %p132
      %p135 = scmp.ne.s32.totalorder %s120, %s134
      %p136 = scmp.eq.s32.totalorder %s26, 0
      %p137 = por %p135, %p136
      %s139 = sadd.s32 %s138, 1
      %p142 = scmp.eq.s32.totalorder %s20, 2
      %p143 = scmp.ne.s32.totalorder %s138, %s140
      %p144 = scmp.eq.s32.totalorder %s20, 0
      %p145 = por %p143, %p144
      %p146 = scmp.ne.s32.totalorder %s138, %s140
      %p147 = scmp.eq.s32.totalorder %s25, 2
      %p148 = por %p146, %p147
      %p149 = scmp.ne.s32.totalorder %s140, %s141
      %p150 = scmp.eq.s32.totalorder %s25, 0
      %p151 = por %p149, %p150
      %p152 = scmp.ne.s32.totalorder %s140, %s141
      %p153 = scmp.eq.s32.totalorder %s26, 2
      %p154 = por %p152, %p153
      %p156 = scmp.ne.s32.totalorder %s141, %s155
      %p157 = scmp.eq.s32.totalorder %s26, 0
      %p158 = por %p156, %p157
      %s160 = sadd.s32 %s159, 1
      %p163 = scmp.eq.s32.totalorder %s20, 2
      %p164 = scmp.ne.s32.totalorder %s159, %s161
      %p165 = scmp.eq.s32.totalorder %s20, 0
      %p166 = por %p164, %p165
      %p167 = scmp.ne.s32.totalorder %s159, %s161
      %p168 = scmp.eq.s32.totalorder %s25, 2
      %p169 = por %p167, %p168
      %p170 = scmp.ne.s32.totalorder %s161, %s162
      %p171 = scmp.eq.s32.totalorder %s25, 0
      %p172 = por %p170, %p171
      %p173 = scmp.ne.s32.totalorder %s161, %s162
      %p174 = scmp.eq.s32.totalorder %s26, 2
      %p175 = por %p173, %p174
      %p177 = scmp.ne.s32.totalorder %s162, %s176
      %p178 = scmp.eq.s32.totalorder %s26, 0
      %p179 = por %p177, %p178
      %s181 = sadd.s32 %s180, 1
      %p184 = scmp.eq.s32.totalorder %s20, 2
      %p185 = scmp.ne.s32.totalorder %s180, %s182
      %p186 = scmp.eq.s32.totalorder %s20, 0
      %p187 = por %p185, %p186
      %p188 = scmp.ne.s32.totalorder %s180, %s182
      %p189 = scmp.eq.s32.totalorder %s25, 2
      %p190 = por %p188, %p189
      %p191 = scmp.ne.s32.totalorder %s182, %s183
      %p192 = scmp.eq.s32.totalorder %s25, 0
      %p193 = por %p191, %p192
      %p194 = scmp.ne.s32.totalorder %s182, %s183
      %p195 = scmp.eq.s32.totalorder %s26, 2
      %p196 = por %p194, %p195
      %p198 = scmp.ne.s32.totalorder %s183, %s197
      %p199 = scmp.eq.s32.totalorder %s26, 0
      %p200 = por %p198, %p199
      %s202 = sadd.s32 %s201, 1
      %p205 = scmp.eq.s32.totalorder %s20, 2
      %p206 = scmp.ne.s32.totalorder %s201, %s203
      %p207 = scmp.eq.s32.totalorder %s20, 0
      %p208 = por %p206, %p207
      %p209 = scmp.ne.s32.totalorder %s201, %s203
      %p210 = scmp.eq.s32.totalorder %s25, 2
      %p211 = por %p209, %p210
      %p212 = scmp.ne.s32.totalorder %s203, %s204
      %p213 = scmp.eq.s32.totalorder %s25, 0
      %p214 = por %p212, %p213
      %p215 = scmp.ne.s32.totalorder %s203, %s204
      %p216 = scmp.eq.s32.totalorder %s26, 2
      %p217 = por %p215, %p216
      %p219 = scmp.ne.s32.totalorder %s204, %s218
      %p220 = scmp.eq.s32.totalorder %s26, 0
      %p221 = por %p219, %p220
      %s222 = ssub.s32 %s20, %s27
      %p223 = scmp.eq.s32.totalorder %s222, 0
      %s225 = sadd.s32 %s224, 1
      %s226 = scalar_select %p223, %s224, %s225
      %p229 = pneg %p223
      %p230 = scmp.eq.s32.totalorder %s20, 2
      %p231 = por %p229, %p230
      %p232 = scmp.ne.s32.totalorder %s224, %s227
      %p233 = scmp.eq.s32.totalorder %s20, 0
      %p234 = por %p232, %p233
      %p235 = scmp.ne.s32.totalorder %s224, %s227
      %p236 = scmp.eq.s32.totalorder %s25, 2
      %p237 = por %p235, %p236
      %p238 = scmp.ne.s32.totalorder %s227, %s228
      %p239 = scmp.eq.s32.totalorder %s25, 0
      %p240 = por %p238, %p239
      %p241 = scmp.ne.s32.totalorder %s227, %s228
      %p242 = scmp.eq.s32.totalorder %s26, 2
      %p243 = por %p241, %p242
      %p245 = scmp.ne.s32.totalorder %s228, %s244
      %p246 = scmp.eq.s32.totalorder %s26, 0
      %p247 = por %p245, %p246
      %p248 = scmp.le.s32.totalorder 1, %s20
      %p249 = scmp.lt.s32.totalorder %s20, 4
      %p250 = pnand %p248, %p249
      %p251 = pneg %p250
      // Predicated region
      $region9: #{tpu_custom_call.1} parent=5 // pred_check
        _
      $region10: #{tpu_custom_call.1} parent=5 // pred_check_branch
        %253 = sbr.rel (%p250) target = $region12
      $region11: #{tpu_custom_call.1} parent=5 // pred_region
        %s254 = ssub.s32 %s20, 1
        // Predicated region
        $region13: #{tpu_custom_call.1} parent=11 // pred_check
          %p255 = pneg %p67
        $region14: #{tpu_custom_call.1} parent=11 // pred_check_branch
          %257 = sbr.rel (%p255) target = $region16
        $region15: #{tpu_custom_call.1} parent=11 // pred_region
          _
        $region16: #{tpu_custom_call.1} parent=11 // pred_fallthru
          _
        // Predicated region
        $region17: #{tpu_custom_call.1} parent=11 // pred_check
          %p258 = pneg %p88
        $region18: #{tpu_custom_call.1} parent=11 // pred_check_branch
          %260 = sbr.rel (%p258) target = $region20
        $region19: #{tpu_custom_call.1} parent=11 // pred_region
          _
        $region20: #{tpu_custom_call.1} parent=11 // pred_fallthru
          _
        // Predicated region
        $region21: #{tpu_custom_call.1} parent=11 // pred_check
          %p261 = pneg %p109
        $region22: #{tpu_custom_call.1} parent=11 // pred_check_branch
          %263 = sbr.rel (%p261) target = $region24
        $region23: #{tpu_custom_call.1} parent=11 // pred_region
          %s265 = ssub.s32 1024, 1024
          %266 = vsyncadd [#allocation3], %s265
          %s267 = sshll.u32 [#allocation2], 4
          %s268 = int_to_ptr.vmem [resolvable:$true] %s267
          %273 = dma.hbm_to_vmem [thread:$0]  %s3, 1024, %s268, [#allocation3], 64, 64, 4
        $region24: #{tpu_custom_call.1} parent=11 // pred_fallthru
          _
        // Predicated region
        $region25: #{tpu_custom_call.1} parent=11 // pred_check
          %p274 = pneg %p130
        $region26: #{tpu_custom_call.1} parent=11 // pred_check_branch
          %276 = sbr.rel (%p274) target = $region28
        $region27: #{tpu_custom_call.1} parent=11 // pred_region
          _
        $region28: #{tpu_custom_call.1} parent=11 // pred_fallthru
          _
        // Predicated region
        $region29: #{tpu_custom_call.1} parent=11 // pred_check
          %p277 = pneg %p151
        $region30: #{tpu_custom_call.1} parent=11 // pred_check_branch
          %279 = sbr.rel (%p277) target = $region32
        $region31: #{tpu_custom_call.1} parent=11 // pred_region
          _
        $region32: #{tpu_custom_call.1} parent=11 // pred_fallthru
          _
        // Predicated region
        $region33: #{tpu_custom_call.1} parent=11 // pred_check
          %p280 = pneg %p172
        $region34: #{tpu_custom_call.1} parent=11 // pred_check_branch
          %282 = sbr.rel (%p280) target = $region36
        $region35: #{tpu_custom_call.1} parent=11 // pred_region
          _
        $region36: #{tpu_custom_call.1} parent=11 // pred_fallthru
          _
        // Predicated region
        $region37: #{tpu_custom_call.1} parent=11 // pred_check
          %p283 = pneg %p193
        $region38: #{tpu_custom_call.1} parent=11 // pred_check_branch
          %285 = sbr.rel (%p283) target = $region40
        $region39: #{tpu_custom_call.1} parent=11 // pred_region
          %s287 = ssub.s32 1024, 1024
          %288 = vsyncadd [#allocation6], %s287
          %s289 = sshll.u32 [#allocation5], 4
          %s290 = int_to_ptr.vmem [resolvable:$true] %s289
          %295 = dma.hbm_to_vmem [thread:$0]  %s7, 1024, %s290, [#allocation6], 64, 64, 4
        $region40: #{tpu_custom_call.1} parent=11 // pred_fallthru
          _
        // Predicated region
        $region41: #{tpu_custom_call.1} parent=11 // pred_check
          %p296 = pneg %p214
        $region42: #{tpu_custom_call.1} parent=11 // pred_check_branch
          %298 = sbr.rel (%p296) target = $region44
        $region43: #{tpu_custom_call.1} parent=11 // pred_region
          _
        $region44: #{tpu_custom_call.1} parent=11 // pred_fallthru
          _
      $region12: #{tpu_custom_call.1} parent=5 // pred_fallthru
        _
      %p299 = scmp.lt.s32.totalorder %s20, 3
      // Predicated region
      $region45: #{tpu_custom_call.1} parent=5 // pred_check
        %p300 = pneg %p299
      $region46: #{tpu_custom_call.1} parent=5 // pred_check_branch
        %302 = sbr.rel (%p300) target = $region48
      $region47: #{tpu_custom_call.1} parent=5 // pred_region
        // Predicated region
        $region49: #{tpu_custom_call.1} parent=47 // pred_check
          %p303 = pneg %p40
        $region50: #{tpu_custom_call.1} parent=47 // pred_check_branch
          %305 = sbr.rel (%p303) target = $region52
        $region51: #{tpu_custom_call.1} parent=47 // pred_region
          %s306 = smul.u32 2, %s20
          %p307 = scmp.lt.s32.totalorder %s306, 5
          %s308 = scalar_select %p307, %s306, 5
          %s309 = smul.addr %s308, 8
          %s310 = scalar_lea.vmem %s0, %s309
          %s311 = smul.u32 2, %s20
        $region52: #{tpu_custom_call.1} parent=47 // pred_fallthru
          _
      $region48: #{tpu_custom_call.1} parent=5 // pred_fallthru
        _
      %p312 = scmp.le.s32.totalorder 1, %s20
      %p313 = scmp.lt.s32.totalorder %s20, 4
      %p314 = pnand %p312, %p313
      %p315 = pneg %p314
      // Predicated region
      $region53: #{tpu_custom_call.1} parent=5 // pred_check
        _
      $region54: #{tpu_custom_call.1} parent=5 // pred_check_branch
        %317 = sbr.rel (%p314) target = $region56
      $region55: #{tpu_custom_call.1} parent=5 // pred_region
        %s318 = ssub.s32 %s20, 1
        // Predicated region
        $region57: #{tpu_custom_call.1} parent=55 // pred_check
          %p319 = pneg %p109
        $region58: #{tpu_custom_call.1} parent=55 // pred_check_branch
          %321 = sbr.rel (%p319) target = $region60
        $region59: #{tpu_custom_call.1} parent=55 // pred_region
          %322 = dma.done [#allocation3], 1024
        $region60: #{tpu_custom_call.1} parent=55 // pred_fallthru
          _
        // Predicated region
        $region61: #{tpu_custom_call.1} parent=55 // pred_check
          %p323 = pneg %p193
        $region62: #{tpu_custom_call.1} parent=55 // pred_check_branch
          %325 = sbr.rel (%p323) target = $region64
        $region63: #{tpu_custom_call.1} parent=55 // pred_region
          %326 = dma.done [#allocation6], 1024
        $region64: #{tpu_custom_call.1} parent=55 // pred_fallthru
          _
        %s327 = smul.u32 2, %s25
        %p328 = scmp.lt.s32.totalorder %s327, 5
        %s329 = scalar_select %p328, %s327, 5
        %s330 = smul.addr %s329, 8
        %s331 = scalar_lea.vmem %s0, %s330
        %p332 = pneg %p46
        %p333 = pneg %p43
        %p334 = pneg %p67
        %p335 = pneg %p64
        %p336 = pneg %p88
        %p337 = pneg %p85
        %p338 = pneg %p109
        %p339 = pneg %p106
        %p340 = pneg %p130
        %p341 = pneg %p127
        %p342 = pneg %p151
        %p343 = pneg %p148
        %p344 = pneg %p172
        %p345 = pneg %p169
        %p346 = pneg %p193
        %p347 = pneg %p190
        %p348 = pneg %p214
        %p349 = pneg %p211
        %p350 = pneg %p240
        %p351 = pneg %p237
        %s352 = sand.u32 %s227, 1
        %s353 = scalar_lea.sflag [#allocation4], %s352
        %s354 = sand.u32 %s227, 1
        %s355 = smul.addr %s354, 16
        %s356 = scalar_lea.vmem [#allocation7], %s355
        %s357 = smul.u32 2, %s25
        %p358 = scmp.lt.s32.totalorder %s357, 5
        %s359 = scalar_select %p358, %s357, 5
        %s360 = smul.addr %s359, 8
        %s361 = scalar_lea.vmem %s0, %s360
        %s362 = smul.u32 2, %s25
        %s363 = smul.u32 2, %s25
        %v365 = vld [vmem:[%s361] sm:$0xff]
        %v366 = vld [vmem:[%s361 + $0x8] sm:$0xff]
        %v367 = vld [vmem:[%s1] sm:$0x3]
        %369 = vset.pattern.permute.xlu0 0
        %370 = vperm.xlu0 %369, %v365
        %v371 = vpop.permute.xlu0 %370
        %374 = vset.pattern.permute.xlu0 0
        %375 = vperm.xlu0 %374, %v366
        %v376 = vpop.permute.xlu0 %375
        %v378 = vlaneseq
        %v379 = vshrl.u32 %v378, 7
        %v380 = vsub.s32 0, %v379
        %v381 = vrot.slane %v367, %v380
        %v382 = vmul.f32 %v371, %v381
        %v383 = vmul.f32 %v376, %v381
        %384 = vset.pattern.permute.xlu0 1
        %385 = vperm.xlu0 %384, %v365
        %v386 = vpop.permute.xlu0 %385
        %388 = vset.pattern.permute.xlu0 1
        %389 = vperm.xlu0 %388, %v366
        %v390 = vpop.permute.xlu0 %389
        %v392 = vlaneseq
        %v393 = vshrl.u32 %v392, 7
        %v394 = vsub.s32 1, %v393
        %v395 = vrot.slane %v367, %v394
        %v396 = vmul.f32 %v386, %v395
        %v397 = vmul.f32 %v390, %v395
        %v398 = vadd.f32 %v382, %v396
        %v399 = vadd.f32 %v383, %v397
        %v400 = vld [vmem:[%s2] sm:$0x1]
        %v402 = vlaneseq
        %v403 = vshrl.u32 %v402, 7
        %v404 = vsub.s32 0, %v403
        %v405 = vrot.slane %v400, %v404
        %v407 = vadd.f32 %v398, %v405
        %v408 = vadd.f32 %v399, %v405
        %v409 = vmax.f32 %v407, 0.0
        %v410 = vmax.f32 %v408, 0.0
        %v411 = vpack.c.bf16 %v410, %v409
        %v412 = vld [vmem:[#allocation2] sm:$0xf]
        %v413 = vld [vmem:[#allocation2 + $0x4] sm:$0xf]
        %v414 = vld [vmem:[#allocation2 + $0x8] sm:$0xf]
        %v415 = vld [vmem:[#allocation2 + $0xc] sm:$0xf]
        %v416 = vld [vmem:[#allocation2 + $0x10] sm:$0xf]
        %v417 = vld [vmem:[#allocation2 + $0x14] sm:$0xf]
        %v418 = vld [vmem:[#allocation2 + $0x18] sm:$0xf]
        %v419 = vld [vmem:[#allocation2 + $0x1c] sm:$0xf]
        %v420 = vld [vmem:[#allocation2 + $0x20] sm:$0xf]
        %v421 = vld [vmem:[#allocation2 + $0x24] sm:$0xf]
        %v422 = vld [vmem:[#allocation2 + $0x28] sm:$0xf]
        %v423 = vld [vmem:[#allocation2 + $0x2c] sm:$0xf]
        %v424 = vld [vmem:[#allocation2 + $0x30] sm:$0xf]
        %v425 = vld [vmem:[#allocation2 + $0x34] sm:$0xf]
        %v426 = vld [vmem:[#allocation2 + $0x38] sm:$0xf]
        %v427 = vld [vmem:[#allocation2 + $0x3c] sm:$0xf]
        %v428 = vld [vmem:[%s4] sm:$0x1]
        %v430 = vlaneseq
        %v431 = vshrl.u32 %v430, 7
        %v432 = vsub.s32 0, %v431
        %v433 = vrot.slane %v428, %v432
        %v451 = vunpack.c.l.b16 %v412
        %v452 = vunpack.c.l.b16 %v413
        %v453 = vunpack.c.l.b16 %v414
        %v454 = vunpack.c.l.b16 %v415
        %v455 = vunpack.c.l.b16 %v416
        %v456 = vunpack.c.l.b16 %v417
        %v457 = vunpack.c.l.b16 %v418
        %v458 = vunpack.c.l.b16 %v419
        %v459 = vunpack.c.l.b16 %v420
        %v460 = vunpack.c.l.b16 %v421
        %v461 = vunpack.c.l.b16 %v422
        %v462 = vunpack.c.l.b16 %v423
        %v463 = vunpack.c.l.b16 %v424
        %v464 = vunpack.c.l.b16 %v425
        %v465 = vunpack.c.l.b16 %v426
        %v466 = vunpack.c.l.b16 %v427
        %v467 = vpack.c.b16 %v452, %v451
        %v468 = vpack.c.b16 %v454, %v453
        %v469 = vpack.c.b16 %v456, %v455
        %v470 = vpack.c.b16 %v458, %v457
        %v471 = vpack.c.b16 %v460, %v459
        %v472 = vpack.c.b16 %v462, %v461
        %v473 = vpack.c.b16 %v464, %v463
        %v474 = vpack.c.b16 %v466, %v465
        %483 = vmatprep.subr.bf16.mxu0 0
        %484 = vmatpush1.bf16.msra.mxu0 %v467
        %485 = vmatprep.subr.bf16.mxu0 0
        %486 = vmatpush1.bf16.msra.mxu0 %v468
        %487 = vmatprep.subr.bf16.mxu0 0
        %488 = vmatpush1.bf16.msra.mxu0 %v469
        %489 = vmatprep.subr.bf16.mxu0 0
        %490 = vmatpush1.bf16.msra.mxu0 %v470
        %491 = vmatprep.subr.bf16.mxu0 0
        %492 = vmatpush1.bf16.msra.mxu0 %v471
        %493 = vmatprep.subr.bf16.mxu0 0
        %494 = vmatpush1.bf16.msra.mxu0 %v472
        %495 = vmatprep.subr.bf16.mxu0 0
        %496 = vmatpush1.bf16.msra.mxu0 %v473
        %497 = vmatprep.subr.bf16.mxu0 0
        %498 = vmatpush1.bf16.msra.mxu0 %v474
        %499 = vmatprep.subr.bf16.mxu0 0
        %500 = vmatpush1.bf16.msra.mxu0 0
        %501 = vmatprep.subr.bf16.mxu0 0
        %502 = vmatpush1.bf16.msra.mxu0 0
        %503 = vmatprep.subr.bf16.mxu0 0
        %504 = vmatpush1.bf16.msra.mxu0 0
        %505 = vmatprep.subr.bf16.mxu0 0
        %506 = vmatpush1.bf16.msra.mxu0 0
        %507 = vmatprep.subr.bf16.mxu0 0
        %508 = vmatpush1.bf16.msra.mxu0 0
        %509 = vmatprep.subr.bf16.mxu0 0
        %510 = vmatpush1.bf16.msra.mxu0 0
        %511 = vmatprep.subr.bf16.mxu0 0
        %512 = vmatpush1.bf16.msra.mxu0 0
        %513 = vmatprep.subr.bf16.mxu0 0
        %514 = vmatpush1.bf16.msra.mxu0 0
        %515 = vmatprep.mubr.bf16.mxu0 0
        %516 = vmatmul.mubr.bf16.gmra.mrb[0].mxu0 %v411
        %v517 = vpop.f32.mrb[0].mxu0
        %v518 = vadd.f32 %v433, %v517
        %v519 = vpop.f32.mrb[0].mxu0
        %v520 = vpop.f32.mrb[0].mxu0
        %v521 = vadd.f32 %v433, %v520
        %v522 = vpop.f32.mrb[0].mxu0
        %523 = vdwg.mxu0
        %v524 = vmax.f32 %v518, 0.0
        %v525 = vmax.f32 %v521, 0.0
        %v526 = vpack.c.bf16 %v525, %v524
        %v527 = vld [vmem:[%s5] sm:$0xf]
        %v528 = vld [vmem:[%s5 + $0x4] sm:$0xf]
        %v529 = vld [vmem:[%s5 + $0x8] sm:$0xf]
        %v530 = vld [vmem:[%s5 + $0xc] sm:$0xf]
        %v531 = vld [vmem:[%s5 + $0x10] sm:$0xf]
        %v532 = vld [vmem:[%s5 + $0x14] sm:$0xf]
        %v533 = vld [vmem:[%s5 + $0x18] sm:$0xf]
        %v534 = vld [vmem:[%s5 + $0x1c] sm:$0xf]
        %v535 = vld [vmem:[%s5 + $0x20] sm:$0xf]
        %v536 = vld [vmem:[%s5 + $0x24] sm:$0xf]
        %v537 = vld [vmem:[%s5 + $0x28] sm:$0xf]
        %v538 = vld [vmem:[%s5 + $0x2c] sm:$0xf]
        %v539 = vld [vmem:[%s5 + $0x30] sm:$0xf]
        %v540 = vld [vmem:[%s5 + $0x34] sm:$0xf]
        %v541 = vld [vmem:[%s5 + $0x38] sm:$0xf]
        %v542 = vld [vmem:[%s5 + $0x3c] sm:$0xf]
        %v543 = vld [vmem:[%s6] sm:$0x1]
        %v545 = vlaneseq
        %v546 = vshrl.u32 %v545, 7
        %v547 = vsub.s32 0, %v546
        %v548 = vrot.slane %v543, %v547
        %v566 = vunpack.c.l.b16 %v527
        %v567 = vunpack.c.l.b16 %v528
        %v568 = vunpack.c.l.b16 %v529
        %v569 = vunpack.c.l.b16 %v530
        %v570 = vunpack.c.l.b16 %v531
        %v571 = vunpack.c.l.b16 %v532
        %v572 = vunpack.c.l.b16 %v533
        %v573 = vunpack.c.l.b16 %v534
        %v574 = vunpack.c.l.b16 %v535
        %v575 = vunpack.c.l.b16 %v536
        %v576 = vunpack.c.l.b16 %v537
        %v577 = vunpack.c.l.b16 %v538
        %v578 = vunpack.c.l.b16 %v539
        %v579 = vunpack.c.l.b16 %v540
        %v580 = vunpack.c.l.b16 %v541
        %v581 = vunpack.c.l.b16 %v542
        %v582 = vpack.c.b16 %v567, %v566
        %v583 = vpack.c.b16 %v569, %v568
        %v584 = vpack.c.b16 %v571, %v570
        %v585 = vpack.c.b16 %v573, %v572
        %v586 = vpack.c.b16 %v575, %v574
        %v587 = vpack.c.b16 %v577, %v576
        %v588 = vpack.c.b16 %v579, %v578
        %v589 = vpack.c.b16 %v581, %v580
        %598 = vmatprep.subr.bf16.mxu0 0
        %599 = vmatpush1.bf16.msra.mxu0 %v582
        %600 = vmatprep.subr.bf16.mxu0 0
        %601 = vmatpush1.bf16.msra.mxu0 %v583
        %602 = vmatprep.subr.bf16.mxu0 0
        %603 = vmatpush1.bf16.msra.mxu0 %v584
        %604 = vmatprep.subr.bf16.mxu0 0
        %605 = vmatpush1.bf16.msra.mxu0 %v585
        %606 = vmatprep.subr.bf16.mxu0 0
        %607 = vmatpush1.bf16.msra.mxu0 %v586
        %608 = vmatprep.subr.bf16.mxu0 0
        %609 = vmatpush1.bf16.msra.mxu0 %v587
        %610 = vmatprep.subr.bf16.mxu0 0
        %611 = vmatpush1.bf16.msra.mxu0 %v588
        %612 = vmatprep.subr.bf16.mxu0 0
        %613 = vmatpush1.bf16.msra.mxu0 %v589
        %614 = vmatprep.subr.bf16.mxu0 0
        %615 = vmatpush1.bf16.msra.mxu0 0
        %616 = vmatprep.subr.bf16.mxu0 0
        %617 = vmatpush1.bf16.msra.mxu0 0
        %618 = vmatprep.subr.bf16.mxu0 0
        %619 = vmatpush1.bf16.msra.mxu0 0
        %620 = vmatprep.subr.bf16.mxu0 0
        %621 = vmatpush1.bf16.msra.mxu0 0
        %622 = vmatprep.subr.bf16.mxu0 0
        %623 = vmatpush1.bf16.msra.mxu0 0
        %624 = vmatprep.subr.bf16.mxu0 0
        %625 = vmatpush1.bf16.msra.mxu0 0
        %626 = vmatprep.subr.bf16.mxu0 0
        %627 = vmatpush1.bf16.msra.mxu0 0
        %628 = vmatprep.subr.bf16.mxu0 0
        %629 = vmatpush1.bf16.msra.mxu0 0
        %630 = vmatprep.mubr.bf16.mxu0 0
        %631 = vmatmul.mubr.bf16.gmra.mrb[0].mxu0 %v526
        %v632 = vpop.f32.mrb[0].mxu0
        %v633 = vadd.f32 %v548, %v632
        %v634 = vpop.f32.mrb[0].mxu0
        %v635 = vpop.f32.mrb[0].mxu0
        %v636 = vadd.f32 %v548, %v635
        %v637 = vpop.f32.mrb[0].mxu0
        %638 = vdwg.mxu0
        %v639 = vmax.f32 %v633, 0.0
        %v640 = vmax.f32 %v636, 0.0
        %v641 = vpack.c.bf16 %v640, %v639
        %v642 = vld [vmem:[#allocation5] sm:$0xf]
        %v643 = vld [vmem:[#allocation5 + $0x4] sm:$0xf]
        %v644 = vld [vmem:[#allocation5 + $0x8] sm:$0xf]
        %v645 = vld [vmem:[#allocation5 + $0xc] sm:$0xf]
        %v646 = vld [vmem:[#allocation5 + $0x10] sm:$0xf]
        %v647 = vld [vmem:[#allocation5 + $0x14] sm:$0xf]
        %v648 = vld [vmem:[#allocation5 + $0x18] sm:$0xf]
        %v649 = vld [vmem:[#allocation5 + $0x1c] sm:$0xf]
        %v650 = vld [vmem:[#allocation5 + $0x20] sm:$0xf]
        %v651 = vld [vmem:[#allocation5 + $0x24] sm:$0xf]
        %v652 = vld [vmem:[#allocation5 + $0x28] sm:$0xf]
        %v653 = vld [vmem:[#allocation5 + $0x2c] sm:$0xf]
        %v654 = vld [vmem:[#allocation5 + $0x30] sm:$0xf]
        %v655 = vld [vmem:[#allocation5 + $0x34] sm:$0xf]
        %v656 = vld [vmem:[#allocation5 + $0x38] sm:$0xf]
        %v657 = vld [vmem:[#allocation5 + $0x3c] sm:$0xf]
        %v658 = vld [vmem:[%s8] sm:$0x1]
        %v660 = vlaneseq
        %v661 = vshrl.u32 %v660, 7
        %v662 = vsub.s32 0, %v661
        %v663 = vrot.slane %v658, %v662
        %v681 = vunpack.c.l.b16 %v642
        %v682 = vunpack.c.l.b16 %v643
        %v683 = vunpack.c.l.b16 %v644
        %v684 = vunpack.c.l.b16 %v645
        %v685 = vunpack.c.l.b16 %v646
        %v686 = vunpack.c.l.b16 %v647
        %v687 = vunpack.c.l.b16 %v648
        %v688 = vunpack.c.l.b16 %v649
        %v689 = vunpack.c.l.b16 %v650
        %v690 = vunpack.c.l.b16 %v651
        %v691 = vunpack.c.l.b16 %v652
        %v692 = vunpack.c.l.b16 %v653
        %v693 = vunpack.c.l.b16 %v654
        %v694 = vunpack.c.l.b16 %v655
        %v695 = vunpack.c.l.b16 %v656
        %v696 = vunpack.c.l.b16 %v657
        %v697 = vpack.c.b16 %v682, %v681
        %v698 = vpack.c.b16 %v684, %v683
        %v699 = vpack.c.b16 %v686, %v685
        %v700 = vpack.c.b16 %v688, %v687
        %v701 = vpack.c.b16 %v690, %v689
        %v702 = vpack.c.b16 %v692, %v691
        %v703 = vpack.c.b16 %v694, %v693
        %v704 = vpack.c.b16 %v696, %v695
        %713 = vmatprep.subr.bf16.mxu0 0
        %714 = vmatpush1.bf16.msra.mxu0 %v697
        %715 = vmatprep.subr.bf16.mxu0 0
        %716 = vmatpush1.bf16.msra.mxu0 %v698
        %717 = vmatprep.subr.bf16.mxu0 0
        %718 = vmatpush1.bf16.msra.mxu0 %v699
        %719 = vmatprep.subr.bf16.mxu0 0
        %720 = vmatpush1.bf16.msra.mxu0 %v700
        %721 = vmatprep.subr.bf16.mxu0 0
        %722 = vmatpush1.bf16.msra.mxu0 %v701
        %723 = vmatprep.subr.bf16.mxu0 0
        %724 = vmatpush1.bf16.msra.mxu0 %v702
        %725 = vmatprep.subr.bf16.mxu0 0
        %726 = vmatpush1.bf16.msra.mxu0 %v703
        %727 = vmatprep.subr.bf16.mxu0 0
        %728 = vmatpush1.bf16.msra.mxu0 %v704
        %729 = vmatprep.subr.bf16.mxu0 0
        %730 = vmatpush1.bf16.msra.mxu0 0
        %731 = vmatprep.subr.bf16.mxu0 0
        %732 = vmatpush1.bf16.msra.mxu0 0
        %733 = vmatprep.subr.bf16.mxu0 0
        %734 = vmatpush1.bf16.msra.mxu0 0
        %735 = vmatprep.subr.bf16.mxu0 0
        %736 = vmatpush1.bf16.msra.mxu0 0
        %737 = vmatprep.subr.bf16.mxu0 0
        %738 = vmatpush1.bf16.msra.mxu0 0
        %739 = vmatprep.subr.bf16.mxu0 0
        %740 = vmatpush1.bf16.msra.mxu0 0
        %741 = vmatprep.subr.bf16.mxu0 0
        %742 = vmatpush1.bf16.msra.mxu0 0
        %743 = vmatprep.subr.bf16.mxu0 0
        %744 = vmatpush1.bf16.msra.mxu0 0
        %745 = vmatprep.mubr.bf16.mxu0 0
        %746 = vmatmul.mubr.bf16.gmra.mrb[0].mxu0 %v641
        %v747 = vpop.f32.mrb[0].mxu0
        %v748 = vadd.f32 %v663, %v747
        %v749 = vpop.f32.mrb[0].mxu0
        %v750 = vpop.f32.mrb[0].mxu0
        %v751 = vadd.f32 %v663, %v750
        %v752 = vpop.f32.mrb[0].mxu0
        %753 = vdwg.mxu0
        %754 = vmax.xlane.f32.xlu0 %v748
        %v755 = vpop.xlane.xlu0 %754
        %756 = vmax.xlane.f32.xlu0 %v751
        %v757 = vpop.xlane.xlu0 %756
        %v758 = vsub.f32 %v748, %v755
        %v759 = vsub.f32 %v751, %v757
        %v760 = vmul.f32 %v758, 1.442695
        %v761 = vpow.pop %v760
        %v762 = vmul.f32 %v759, 1.442695
        %v763 = vpow.pop %v762
        %764 = vadd.xlane.f32.xlu0 %v761
        %v765 = vpop.xlane.xlu0 %764
        %766 = vadd.xlane.f32.xlu0 %v763
        %v767 = vpop.xlane.xlu0 %766
        %v768 = vrcp.pop %v765
        %v769 = vrcp.pop %v767
        %v770 = vmul.f32 %v761, %v768
        %v771 = vmul.f32 %v763, %v769
        %772 = vst [vmem:[%s356] sm:$0xff] %v770
        %773 = vst [vmem:[%s356 + $0x8] sm:$0xff] %v771
        %s774 = sand.u32 %s227, 1
        %s775 = scalar_lea.sflag [#allocation4], %s774
        %s776 = sand.u32 %s227, 1
        %s777 = smul.addr %s776, 16
        %s778 = scalar_lea.vmem [#allocation7], %s777
        // Predicated region
        $region65: #{tpu_custom_call.1} parent=55 // pred_check
          %p779 = pneg %p237
        $region66: #{tpu_custom_call.1} parent=55 // pred_check_branch
          %781 = sbr.rel (%p779) target = $region68
        $region67: #{tpu_custom_call.1} parent=55 // pred_region
          %s782 = smul.u32 2, %s25
          %s784 = ssub.s32 256, 256
          %785 = vsyncadd %s775, %s784
          %s786 = smul.addr %s782, 128
          %s787 = scalar_lea.hbm %s9, %s786
          %s788 = sshll.u32 %s778, 4
          %s789 = int_to_ptr.vmem [resolvable:$true] %s788
          %794 = dma.vmem_to_hbm [thread:$0]  %s789, 256, %s787, %s775, 128, 128, 8
        $region68: #{tpu_custom_call.1} parent=55 // pred_fallthru
          _
      $region56: #{tpu_custom_call.1} parent=5 // pred_fallthru
        _
      %p795 = scmp.le.s32.totalorder 2, %s20
      // Predicated region
      $region69: #{tpu_custom_call.1} parent=5 // pred_check
        %p796 = pneg %p795
      $region70: #{tpu_custom_call.1} parent=5 // pred_check_branch
        %798 = sbr.rel (%p796) target = $region72
      $region71: #{tpu_custom_call.1} parent=5 // pred_region
        %s799 = ssub.s32 %s20, 2
        // Predicated region
        $region73: #{tpu_custom_call.1} parent=71 // pred_check
          %p800 = pneg %p243
        $region74: #{tpu_custom_call.1} parent=71 // pred_check_branch
          %802 = sbr.rel (%p800) target = $region76
        $region75: #{tpu_custom_call.1} parent=71 // pred_region
          %s803 = sand.u32 %s228, 1
          %s804 = scalar_lea.sflag [#allocation4], %s803
          %s805 = sand.u32 %s228, 1
          %s806 = smul.addr %s805, 16
          %s807 = scalar_lea.vmem [#allocation7], %s806
          %808 = dma.done %s804, 256
        $region76: #{tpu_custom_call.1} parent=71 // pred_fallthru
          _
      $region72: #{tpu_custom_call.1} parent=5 // pred_fallthru
        _
    $region6: #{tpu_custom_call.1} parent=1 // loop_footer
      %s24 = sadd.s32 1, %s20
    $region7: #{tpu_custom_call.1} parent=1 // loop_footer_branch
      %19 = sbr.rel target = $region3
    $region8: #{tpu_custom_call.1} parent=1 // loop_exit
      _
    %809 = vsyncpa [#allocation3], 1
    %s810 = scalar_lea.sflag [#allocation3], 1
    %811 = vsyncpa %s810, 1
    %812 = vsyncpa [#allocation6], 1
    %813 = vsyncpa [#allocation4], 1
    %s814 = scalar_lea.sflag [#allocation4], 1
    %815 = vsyncpa %s814, 1

</llo_original>
